<compile_context>
chip_gen: v7x
topology: tpu7x:2x2x1
jax: 0.10.0
libtpu: 0.0.40
codegen_flags: <defaults>
</compile_context>

<pallas_src>
import numpy as np

import jax
import jax.numpy as jnp
from jax.experimental import pallas as pl
from jax.experimental.pallas import tpu as pltpu


# ---------------------------------------------------------------------------
# Pallas kernel: one image per grid step, channels-major (C, H*W) layout.
# ---------------------------------------------------------------------------
def _spp_kernel(x_ref, wid_ref, wkf_ref, skc_ref, bkc_ref, mask_ref,
                w2k_ref, pT_ref, uT_ref, s2_ref, b2_ref, o_ref):
    # x_ref    (1, Cin, HW)   bf16
    # wid_ref  (Cout, Cin)    bf16   conv2(identity rows) @ conv1, folded
    # wkf_ref  (num*Cpy, Cin) bf16   per-scale conv @ conv1, stacked, folded
    # skc_ref  (num*Cpy, 1)   f32    folded per-scale BN scale
    # bkc_ref  (num*Cpy, 1)   f32    folded per-scale BN bias
    # mask_ref (num*Cpy, S)   f32    block mask killing cross-scale terms
    # w2k_ref  (Cout, num*Cpy) bf16  conv2 rows for the pyramid branches
    # pT_ref   (HW, S)        bf16   stacked adaptive-avg-pool matrix (transposed)
    # uT_ref   (S, HW)        bf16   stacked bilinear (align_corners) upsample
    # s2_ref   (Cout, 1)      f32    folded BN2 scale
    # b2_ref   (Cout, 1)      f32    folded BN2 bias
    # o_ref    (1, Cout, HW)
    cdt = wid_ref.dtype
    x = x_ref[0]                                                     # (Cin, HW)

    # Identity branch, conv1 folded into conv2: (Cout, HW) f32 accumulator.
    acc = jnp.dot(wid_ref[...], x, preferred_element_type=jnp.float32)

    # Pooled bottleneck (all scales fused): pool the *raw* input, then apply
    # the folded per-scale convs inside the tiny S = sum(r^2) bottleneck.
    pooled = jnp.dot(x, pT_ref[...], preferred_element_type=jnp.float32)   # (Cin, S)
    z = jnp.dot(wkf_ref[...], pooled.astype(cdt),
                preferred_element_type=jnp.float32)                        # (num*Cpy, S)
    z = jnp.maximum(z * skc_ref[...] + bkc_ref[...], 0.0) * mask_ref[...]  # BN+ReLU+mask
    c = jnp.dot(w2k_ref[...], z.astype(cdt),
                preferred_element_type=jnp.float32)                        # (Cout, S)
    acc = acc + jnp.dot(c.astype(cdt), uT_ref[...],
                        preferred_element_type=jnp.float32)                # (Cout, HW)

    # Fused BN2 + ReLU epilogue in f32, single lane-dense store.
    out = jnp.maximum(acc * s2_ref[...] + b2_ref[...], 0.0)
    o_ref[0] = out.astype(o_ref.dtype)


# ---------------------------------------------------------------------------
# Small separable pooling / interpolation factor matrices (numpy, tiny).
# ---------------------------------------------------------------------------
def _adaptive_pool_matrix(out_size, in_size):
    """PyTorch adaptive_avg_pool1d as a (out_size, in_size) averaging matrix."""
    m = np.zeros((out_size, in_size), np.float32)
    for i in range(out_size):
        start = (i * in_size) // out_size
        end = -((-(i + 1) * in_size) // out_size)  # ceil((i+1)*in/out)
        m[i, start:end] = 1.0 / float(end - start)
    return m


def _interp_matrix(out_size, in_size):
    """Bilinear (align_corners=True) 1-D interpolation matrix (out, in)."""
    m = np.zeros((out_size, in_size), np.float32)
    if in_size == 1:
        m[:, 0] = 1.0
        return m
    if out_size == 1:
        m[0, 0] = 1.0
        return m
    scale = (in_size - 1) / (out_size - 1)
    for i in range(out_size):
        src = i * scale
        i0 = min(max(int(np.floor(src)), 0), in_size - 1)
        i1 = min(i0 + 1, in_size - 1)
        frac = src - i0
        m[i, i0] += 1.0 - frac
        m[i, i1] += frac
    return m


def _fold_bn(gamma, beta, mean, var, eps=1e-5):
    scale = gamma / jnp.sqrt(var + eps)
    bias = beta - mean * scale
    return scale, bias


def _nbytes(shape, dtype):
    return int(np.prod(shape)) * np.dtype(dtype).itemsize


# ---------------------------------------------------------------------------
# Wrapper: NCHW in, NCHW out, no transposes.
# ---------------------------------------------------------------------------
def spp_forward(x_nchw, params, rates, *, compute_dtype=jnp.bfloat16,
                out_dtype=jnp.float32):
    HP = jax.lax.Precision.HIGHEST
    N, Cin, H, W = x_nchw.shape
    HW = H * W
    num = len(rates)

    w1 = params["w1"]                      # (Cspp, Cin)
    w2 = params["w2"]                      # (Cout, Cspp + num*Cpy)
    Cspp = w1.shape[0]
    Cout = w2.shape[0]
    Cpy = params["wk"][0].shape[0]
    S = sum(r * r for r in rates)

    # ---- offline weight folding (f32, HIGHEST), then cast to compute dtype --
    w_id = jnp.matmul(w2[:, :Cspp], w1, precision=HP).astype(compute_dtype)   # (Cout, Cin)
    wkf = jnp.concatenate(
        [jnp.matmul(params["wk"][s], w1, precision=HP) for s in range(num)],
        axis=0).astype(compute_dtype)                                          # (num*Cpy, Cin)
    skc = jnp.concatenate([params["sk"][s] for s in range(num)]).reshape(num * Cpy, 1)
    bkc = jnp.concatenate([params["bk"][s] for s in range(num)]).reshape(num * Cpy, 1)
    w2k = jnp.concatenate(
        [w2[:, Cspp + s * Cpy: Cspp + (s + 1) * Cpy] for s in range(num)],
        axis=1).astype(compute_dtype)                                          # (Cout, num*Cpy)
    s2c = params["s2"].reshape(Cout, 1).astype(jnp.float32)
    b2c = params["b2"].reshape(Cout, 1).astype(jnp.float32)

    # ---- stacked pool / upsample matrices and block mask (tiny) -------------
    p_blocks, u_blocks = [], []
    mask_np = np.zeros((num * Cpy, S), np.float32)
    col = 0
    for s, r in enumerate(rates):
        p_blocks.append(np.kron(_adaptive_pool_matrix(r, H),
                                _adaptive_pool_matrix(r, W)))   # (r*r, HW)
        u_blocks.append(np.kron(_interp_matrix(H, r),
                                _interp_matrix(W, r)))          # (HW, r*r)
        mask_np[s * Cpy:(s + 1) * Cpy, col:col + r * r] = 1.0
        col += r * r
    pT = jnp.asarray(np.concatenate(p_blocks, axis=0).T, compute_dtype)   # (HW, S)
    uT = jnp.asarray(np.concatenate(u_blocks, axis=1).T, compute_dtype)   # (S, HW)
    mask = jnp.asarray(mask_np)                                           # (num*Cpy, S) f32

    x = x_nchw.reshape(N, Cin, HW).astype(compute_dtype)

    consts = [w_id, wkf, skc, bkc, mask, w2k, pT, uT, s2c, b2c]

    def const_spec(arr):
        shp = arr.shape
        return pl.BlockSpec(shp, lambda n: (0,) * len(shp),
                            pipeline_mode=pl.Buffered(1))

    in_specs = [pl.BlockSpec((1, Cin, HW), lambda n: (n, 0, 0))]
    in_specs += [const_spec(a) for a in consts]

    # Explicit scoped-VMEM budget: 2x input block + 2x output block +
    # single-buffered constants + f32 intermediates, with headroom (cap 64 MiB
    # for v7x physical VMEM, floor 32 MiB).
    need = (2 * _nbytes((Cin, HW), compute_dtype)
            + 2 * _nbytes((Cout, HW), out_dtype)
            + sum(_nbytes(a.shape, a.dtype) for a in consts)
            + 3 * _nbytes((Cout, HW), np.float32))
    vmem_limit = int(min(64 * 2**20, max(32 * 2**20, int(need * 1.5))))

    out_flat = pl.pallas_call(
        _spp_kernel,
        out_shape=jax.ShapeDtypeStruct((N, Cout, HW), out_dtype),
        grid=(N,),
        in_specs=in_specs,
        out_specs=pl.BlockSpec((1, Cout, HW), lambda n: (n, 0, 0)),
        compiler_params=pltpu.CompilerParams(
            dimension_semantics=("parallel",),
            vmem_limit_bytes=vmem_limit),
    )(x, *consts)

    return out_flat.reshape(N, Cout, H, W)   # already NCHW


# ---------------------------------------------------------------------------
# Pure-JAX reference mirroring the PyTorch module structure (for checking).
# ---------------------------------------------------------------------------
def _reference(x_nchw, params, rates):
    P = jax.lax.Precision.HIGHEST
    N, Cin, H, W = x_nchw.shape
    x = x_nchw.reshape(N, Cin, H * W).astype(jnp.float32)

    x1 = jnp.einsum("oc,ncp->nop", params["w1"], x, precision=P)       # (N,Cspp,HW)
    pyr = [x1]
    for s, r in enumerate(rates):
        Pk = jnp.asarray(np.kron(_adaptive_pool_matrix(r, H),
                                 _adaptive_pool_matrix(r, W)))
        Uk = jnp.asarray(np.kron(_interp_matrix(H, r), _interp_matrix(W, r)))
        pooled = jnp.einsum("qp,ncp->ncq", Pk, x1, precision=P)        # (N,Cspp,r*r)
        z = jnp.einsum("oc,ncq->noq", params["wk"][s], pooled, precision=P)
        z = jnp.maximum(z * params["sk"][s][None, :, None]
                        + params["bk"][s][None, :, None], 0.0)
        pyr.append(jnp.einsum("pq,noq->nop", Uk, z, precision=P))      # (N,Cpy,HW)
    cat = jnp.concatenate(pyr, axis=1)
    out = jnp.einsum("oc,ncp->nop", params["w2"], cat, precision=P)
    out = jnp.maximum(out * params["s2"][None, :, None]
                      + params["b2"][None, :, None], 0.0)
    Cout = params["w2"].shape[0]
    return out.reshape(N, Cout, H, W)


# ---------------------------------------------------------------------------
def make_params(key, in_planes, spp_planes, py_planes, out_planes, rates):
    num = len(rates)
    cat_planes = spp_planes + num * py_planes
    keys = jax.random.split(key, 1 + 5 * num + 5)
    ki = iter(keys)

    w1 = jax.random.normal(next(ki), (spp_planes, in_planes), jnp.float32) * 0.1

    wk, sk, bk = [], [], []
    for _ in rates:
        wk.append(jax.random.normal(next(ki), (py_planes, spp_planes), jnp.float32) * 0.1)
        g = jax.random.uniform(next(ki), (py_planes,), jnp.float32, 0.5, 1.5)
        be = jax.random.normal(next(ki), (py_planes,), jnp.float32) * 0.1
        m = jax.random.normal(next(ki), (py_planes,), jnp.float32) * 0.1
        v = jax.random.uniform(next(ki), (py_planes,), jnp.float32, 0.5, 1.5)
        s, b = _fold_bn(g, be, m, v)
        sk.append(s)
        bk.append(b)

    w2 = jax.random.normal(next(ki), (out_planes, cat_planes), jnp.float32) * 0.1
    g2 = jax.random.uniform(next(ki), (out_planes,), jnp.float32, 0.5, 1.5)
    be2 = jax.random.normal(next(ki), (out_planes,), jnp.float32) * 0.1
    m2 = jax.random.normal(next(ki), (out_planes,), jnp.float32) * 0.1
    v2 = jax.random.uniform(next(ki), (out_planes,), jnp.float32, 0.5, 1.5)
    s2, b2 = _fold_bn(g2, be2, m2, v2)

    return {"w1": w1, "wk": wk, "sk": sk, "bk": bk,
            "w2": w2, "s2": s2, "b2": b2}


if __name__ == "__main__":
    key = jax.random.PRNGKey(0)
    k_x, k_p = jax.random.split(key, 2)

    # Small shapes consistent with the module (real: 1024/512/128/256, big H,W).
    # Note: the module requires num_scales * py_planes == spp_planes (conv2 has
    # spp+spp input channels); these shapes respect that.
    N = 2
    in_planes, spp_planes, py_planes, out_planes = 32, 32, 8, 64
    H = W = 16
    rates = [1, 2, 3, 6]

    x = jax.random.normal(k_x, (N, in_planes, H, W), jnp.float32)
    params = make_params(k_p, in_planes, spp_planes, py_planes, out_planes, rates)

    out = jax.block_until_ready(spp_forward(x, params, rates))
    ref = jax.block_until_ready(_reference(x, params, rates))

    assert out.shape == (N, out_planes, H, W), out.shape
    # bf16 matmul operands + offline weight folding -> compare against the f32
    # unfused reference with a bf16-appropriate tolerance.
    assert jnp.allclose(out, ref, atol=3e-2, rtol=3e-2), float(
        jnp.max(jnp.abs(out - ref)))
    print("KERNEL_OK")
</pallas_src>

<mosaic_0001>
module attributes {stable_mosaic.version = 11 : i64} {
  func.func @_spp_kernel(%arg0: i32, %arg1: memref<1x32x256xbf16, #tpu.memory_space<vmem>>, %arg2: memref<64x32xbf16, #tpu.memory_space<vmem>>, %arg3: memref<32x32xbf16, #tpu.memory_space<vmem>>, %arg4: memref<32x1xf32, #tpu.memory_space<vmem>>, %arg5: memref<32x1xf32, #tpu.memory_space<vmem>>, %arg6: memref<32x50xf32, #tpu.memory_space<vmem>>, %arg7: memref<64x32xbf16, #tpu.memory_space<vmem>>, %arg8: memref<256x50xbf16, #tpu.memory_space<vmem>>, %arg9: memref<50x256xbf16, #tpu.memory_space<vmem>>, %arg10: memref<64x1xf32, #tpu.memory_space<vmem>>, %arg11: memref<64x1xf32, #tpu.memory_space<vmem>>, %arg12: memref<1x64x256xf32, #tpu.memory_space<vmem>>) attributes {dimension_semantics = [#tpu.dimension_semantics<parallel>], iteration_bounds = array<i64: 2>, scalar_prefetch = 0 : i64, scratch_operands = 0 : i64, tpu.core_type = #tpu.core_type<tc>, window_params = [{transform_indices = @transform_0, window_bounds = array<i64: 1, 32, 256>}, {pipeline_mode = #tpu.pipeline_mode<synchronous>, transform_indices = @transform_1, window_bounds = array<i64: 64, 32>}, {pipeline_mode = #tpu.pipeline_mode<synchronous>, transform_indices = @transform_2, window_bounds = array<i64: 32, 32>}, {pipeline_mode = #tpu.pipeline_mode<synchronous>, transform_indices = @transform_3, window_bounds = array<i64: 32, 1>}, {pipeline_mode = #tpu.pipeline_mode<synchronous>, transform_indices = @transform_4, window_bounds = array<i64: 32, 1>}, {pipeline_mode = #tpu.pipeline_mode<synchronous>, transform_indices = @transform_5, window_bounds = array<i64: 32, 50>}, {pipeline_mode = #tpu.pipeline_mode<synchronous>, transform_indices = @transform_6, window_bounds = array<i64: 64, 32>}, {pipeline_mode = #tpu.pipeline_mode<synchronous>, transform_indices = @transform_7, window_bounds = array<i64: 256, 50>}, {pipeline_mode = #tpu.pipeline_mode<synchronous>, transform_indices = @transform_8, window_bounds = array<i64: 50, 256>}, {pipeline_mode = #tpu.pipeline_mode<synchronous>, transform_indices = @transform_9, window_bounds = array<i64: 64, 1>}, {pipeline_mode = #tpu.pipeline_mode<synchronous>, transform_indices = @transform_10, window_bounds = array<i64: 64, 1>}, {transform_indices = @transform_11, window_bounds = array<i64: 1, 64, 256>}]} {
    %c0 = arith.constant 0 : index
    %c0_0 = arith.constant 0 : index
    %c0_1 = arith.constant 0 : index
    %0 = vector.load %arg1[%c0, %c0_0, %c0_1] : memref<1x32x256xbf16, #tpu.memory_space<vmem>>, vector<1x32x256xbf16>
    %1 = vector.shape_cast %0 : vector<1x32x256xbf16> to vector<32x256xbf16>
    %c0_2 = arith.constant 0 : index
    %c0_3 = arith.constant 0 : index
    %2 = vector.load %arg2[%c0_2, %c0_3] : memref<64x32xbf16, #tpu.memory_space<vmem>>, vector<64x32xbf16>
    %cst = arith.constant dense<0.000000e+00> : vector<64x256xf32>
    %3 = tpu.matmul %2, %1, %cst {dimension_numbers = #tpu.dot_dimension_numbers<[1], [0], [0], [1], [0, 0, 1, 1], [], []>} : vector<64x32xbf16>, vector<32x256xbf16>, vector<64x256xf32> -> vector<64x256xf32>
    %c0_4 = arith.constant 0 : index
    %c0_5 = arith.constant 0 : index
    %4 = vector.load %arg8[%c0_4, %c0_5] : memref<256x50xbf16, #tpu.memory_space<vmem>>, vector<256x50xbf16>
    %cst_6 = arith.constant dense<0.000000e+00> : vector<32x50xf32>
    %5 = tpu.matmul %1, %4, %cst_6 {dimension_numbers = #tpu.dot_dimension_numbers<[1], [0], [0], [1], [0, 0, 1, 1], [], []>} : vector<32x256xbf16>, vector<256x50xbf16>, vector<32x50xf32> -> vector<32x50xf32>
    %c0_7 = arith.constant 0 : index
    %c0_8 = arith.constant 0 : index
    %6 = vector.load %arg3[%c0_7, %c0_8] : memref<32x32xbf16, #tpu.memory_space<vmem>>, vector<32x32xbf16>
    %7 = arith.truncf %5 : vector<32x50xf32> to vector<32x50xbf16>
    %cst_9 = arith.constant dense<0.000000e+00> : vector<32x50xf32>
    %8 = tpu.matmul %6, %7, %cst_9 {dimension_numbers = #tpu.dot_dimension_numbers<[1], [0], [0], [1], [0, 0, 1, 1], [], []>} : vector<32x32xbf16>, vector<32x50xbf16>, vector<32x50xf32> -> vector<32x50xf32>
    %c0_10 = arith.constant 0 : index
    %c0_11 = arith.constant 0 : index
    %9 = vector.load %arg4[%c0_10, %c0_11] : memref<32x1xf32, #tpu.memory_space<vmem>>, vector<32x1xf32>
    %10 = vector.broadcast %9 : vector<32x1xf32> to vector<32x50xf32>
    %11 = arith.mulf %8, %10 : vector<32x50xf32>
    %c0_12 = arith.constant 0 : index
    %c0_13 = arith.constant 0 : index
    %12 = vector.load %arg5[%c0_12, %c0_13] : memref<32x1xf32, #tpu.memory_space<vmem>>, vector<32x1xf32>
    %13 = vector.broadcast %12 : vector<32x1xf32> to vector<32x50xf32>
    %14 = arith.addf %11, %13 : vector<32x50xf32>
    %cst_14 = arith.constant 0.000000e+00 : f32
    %15 = vector.broadcast %cst_14 : f32 to vector<32x50xf32>
    %16 = arith.maximumf %14, %15 : vector<32x50xf32>
    %c0_15 = arith.constant 0 : index
    %c0_16 = arith.constant 0 : index
    %17 = vector.load %arg6[%c0_15, %c0_16] : memref<32x50xf32, #tpu.memory_space<vmem>>, vector<32x50xf32>
    %18 = arith.mulf %16, %17 : vector<32x50xf32>
    %c0_17 = arith.constant 0 : index
    %c0_18 = arith.constant 0 : index
    %19 = vector.load %arg7[%c0_17, %c0_18] : memref<64x32xbf16, #tpu.memory_space<vmem>>, vector<64x32xbf16>
    %20 = arith.truncf %18 : vector<32x50xf32> to vector<32x50xbf16>
    %cst_19 = arith.constant dense<0.000000e+00> : vector<64x50xf32>
    %21 = tpu.matmul %19, %20, %cst_19 {dimension_numbers = #tpu.dot_dimension_numbers<[1], [0], [0], [1], [0, 0, 1, 1], [], []>} : vector<64x32xbf16>, vector<32x50xbf16>, vector<64x50xf32> -> vector<64x50xf32>
    %22 = arith.truncf %21 : vector<64x50xf32> to vector<64x50xbf16>
    %c0_20 = arith.constant 0 : index
    %c0_21 = arith.constant 0 : index
    %23 = vector.load %arg9[%c0_20, %c0_21] : memref<50x256xbf16, #tpu.memory_space<vmem>>, vector<50x256xbf16>
    %cst_22 = arith.constant dense<0.000000e+00> : vector<64x256xf32>
    %24 = tpu.matmul %22, %23, %cst_22 {dimension_numbers = #tpu.dot_dimension_numbers<[1], [0], [0], [1], [0, 0, 1, 1], [], []>} : vector<64x50xbf16>, vector<50x256xbf16>, vector<64x256xf32> -> vector<64x256xf32>
    %25 = arith.addf %3, %24 : vector<64x256xf32>
    %c0_23 = arith.constant 0 : index
    %c0_24 = arith.constant 0 : index
    %26 = vector.load %arg10[%c0_23, %c0_24] : memref<64x1xf32, #tpu.memory_space<vmem>>, vector<64x1xf32>
    %27 = vector.broadcast %26 : vector<64x1xf32> to vector<64x256xf32>
    %28 = arith.mulf %25, %27 : vector<64x256xf32>
    %c0_25 = arith.constant 0 : index
    %c0_26 = arith.constant 0 : index
    %29 = vector.load %arg11[%c0_25, %c0_26] : memref<64x1xf32, #tpu.memory_space<vmem>>, vector<64x1xf32>
    %30 = vector.broadcast %29 : vector<64x1xf32> to vector<64x256xf32>
    %31 = arith.addf %28, %30 : vector<64x256xf32>
    %cst_27 = arith.constant 0.000000e+00 : f32
    %32 = vector.broadcast %cst_27 : f32 to vector<64x256xf32>
    %33 = arith.maximumf %31, %32 : vector<64x256xf32>
    %c0_28 = arith.constant 0 : index
    %c0_29 = arith.constant 0 : index
    %c0_30 = arith.constant 0 : index
    %34 = vector.load %arg12[%c0_28, %c0_29, %c0_30] : memref<1x64x256xf32, #tpu.memory_space<vmem>>, vector<1x64x256xf32>
    %35 = vector.shape_cast %34 : vector<1x64x256xf32> to vector<64x256xf32>
    %36 = vector.shape_cast %33 : vector<64x256xf32> to vector<1x64x256xf32>
    tpu.vector_store %arg12[%c0_28, %c0_29, %c0_30], %36 {strides = array<i32>} : memref<1x64x256xf32, #tpu.memory_space<vmem>>, vector<1x64x256xf32>,
    return
  }
  func.func @transform_0(%arg0: i32) -> (i32, i32, i32) {
    %c0_i32 = arith.constant 0 : i32
    %c0_i32_0 = arith.constant 0 : i32
    %c0_i32_1 = arith.constant 0 : i32
    return %arg0, %c0_i32, %c0_i32_0 : i32, i32, i32
  }
  func.func @transform_1(%arg0: i32) -> (i32, i32) {
    %c0_i32 = arith.constant 0 : i32
    %c0_i32_0 = arith.constant 0 : i32
    %c0_i32_1 = arith.constant 0 : i32
    return %c0_i32, %c0_i32_0 : i32, i32
  }
  func.func @transform_2(%arg0: i32) -> (i32, i32) {
    %c0_i32 = arith.constant 0 : i32
    %c0_i32_0 = arith.constant 0 : i32
    %c0_i32_1 = arith.constant 0 : i32
    return %c0_i32, %c0_i32_0 : i32, i32
  }
  func.func @transform_3(%arg0: i32) -> (i32, i32) {
    %c0_i32 = arith.constant 0 : i32
    %c0_i32_0 = arith.constant 0 : i32
    %c0_i32_1 = arith.constant 0 : i32
    return %c0_i32, %c0_i32_0 : i32, i32
  }
  func.func @transform_4(%arg0: i32) -> (i32, i32) {
    %c0_i32 = arith.constant 0 : i32
    %c0_i32_0 = arith.constant 0 : i32
    %c0_i32_1 = arith.constant 0 : i32
    return %c0_i32, %c0_i32_0 : i32, i32
  }
  func.func @transform_5(%arg0: i32) -> (i32, i32) {
    %c0_i32 = arith.constant 0 : i32
    %c0_i32_0 = arith.constant 0 : i32
    %c0_i32_1 = arith.constant 0 : i32
    return %c0_i32, %c0_i32_0 : i32, i32
  }
  func.func @transform_6(%arg0: i32) -> (i32, i32) {
    %c0_i32 = arith.constant 0 : i32
    %c0_i32_0 = arith.constant 0 : i32
    %c0_i32_1 = arith.constant 0 : i32
    return %c0_i32, %c0_i32_0 : i32, i32
  }
  func.func @transform_7(%arg0: i32) -> (i32, i32) {
    %c0_i32 = arith.constant 0 : i32
    %c0_i32_0 = arith.constant 0 : i32
    %c0_i32_1 = arith.constant 0 : i32
    return %c0_i32, %c0_i32_0 : i32, i32
  }
  func.func @transform_8(%arg0: i32) -> (i32, i32) {
    %c0_i32 = arith.constant 0 : i32
    %c0_i32_0 = arith.constant 0 : i32
    %c0_i32_1 = arith.constant 0 : i32
    return %c0_i32, %c0_i32_0 : i32, i32
  }
  func.func @transform_9(%arg0: i32) -> (i32, i32) {
    %c0_i32 = arith.constant 0 : i32
    %c0_i32_0 = arith.constant 0 : i32
    %c0_i32_1 = arith.constant 0 : i32
    return %c0_i32, %c0_i32_0 : i32, i32
  }
  func.func @transform_10(%arg0: i32) -> (i32, i32) {
    %c0_i32 = arith.constant 0 : i32
    %c0_i32_0 = arith.constant 0 : i32
    %c0_i32_1 = arith.constant 0 : i32
    return %c0_i32, %c0_i32_0 : i32, i32
  }
  func.func @transform_11(%arg0: i32) -> (i32, i32, i32) {
    %c0_i32 = arith.constant 0 : i32
    %c0_i32_0 = arith.constant 0 : i32
    %c0_i32_1 = arith.constant 0 : i32
    return %arg0, %c0_i32, %c0_i32_0 : i32, i32, i32
  }
}

</mosaic_0001>

<llo_original>
// kernel: tpu_custom_call.1
$region0: #{tpu_custom_call.1}
  #allocation0 [shape = 'u32[]', space=smem, size = 0x4, offset = 0x4, fixed_abs, tag = 'smem constant byte address 0x4 - core index']
  #allocation1 [shape = 'u32[144,128]{1,0:T(1,128)}', space=vmem, size = 0x12000, scoped, tag = 'internal scratch']
  %s0 = inlined_call_operand.vmem [shape: bf16[2,32,256], index: 0, kind: input, shape index: {}]
  %s1 = inlined_call_operand.vmem [shape: bf16[64,32], index: 1, kind: input, shape index: {}]
  %s2 = inlined_call_operand.vmem [shape: bf16[32,32], index: 2, kind: input, shape index: {}]
  %s3 = inlined_call_operand.vmem [shape: f32[32,1], index: 3, kind: input, shape index: {}]
  %s4 = inlined_call_operand.vmem [shape: f32[32,1], index: 4, kind: input, shape index: {}]
  %s5 = inlined_call_operand.vmem [shape: f32[32,50], index: 5, kind: input, shape index: {}]
  %s6 = inlined_call_operand.vmem [shape: bf16[64,32], index: 6, kind: input, shape index: {}]
  %s7 = inlined_call_operand.vmem [shape: bf16[256,50], index: 7, kind: input, shape index: {}]
  %s8 = inlined_call_operand.vmem [shape: bf16[50,256], index: 8, kind: input, shape index: {}]
  %s9 = inlined_call_operand.vmem [shape: f32[64,1], index: 9, kind: input, shape index: {}]
  %s10 = inlined_call_operand.vmem [shape: f32[64,1], index: 10, kind: input, shape index: {}]
  %s11 = inlined_call_operand.hbm [shape: f32[2,64,256], index: 11, kind: output, shape index: {}]
  %s12 = sld [smem:[#allocation0]]
  $region77: #{tpu_custom_call.1} parent=0
    _
  %s14 = ssub.s32 1, %s12
  %s15 = scalar_select 0, %s14, %s12
  $region1: #{tpu_custom_call.1} parent=0
    #allocation2 [shape = 'u8[131072]{0}', space=vmem, size = 0x20000, scoped, tag = 'output window, operand 0']
    #allocation3 [shape = 's32[2]{0}', space=sflag, size = 0x8, scoped, tag = 'scoped memory for tpu_custom_call.1']
    %16 = vsyncpa [#allocation3], 0
    %s17 = scalar_lea.sflag [#allocation3], 1
    %18 = vsyncpa %s17, 0
    loop: start=0, step=1, limit=4
    $region2: #{tpu_custom_call.1} parent=1 // loop_pre_header
      _
    $region3: #{tpu_custom_call.1} parent=1 // loop_header
      %s20 = sphi 0, %s24
      %p21 = scmp.ge.s32.totalorder %s20, 4
      %s30 = sphi 0, %s32
      %s33 = sphi 0, %s30
      %s34 = sphi 0, %s33
      %s50 = sphi 0, %s34
      %s54 = sphi 0, %s54
      %s56 = sphi 0, %s54
      %s57 = sphi 0, %s56
      %s71 = sphi 0, %s57
      %s75 = sphi 0, %s75
      %s77 = sphi 0, %s75
      %s78 = sphi 0, %s77
      %s92 = sphi 0, %s78
      %s96 = sphi 0, %s96
      %s98 = sphi 0, %s96
      %s99 = sphi 0, %s98
      %s113 = sphi 0, %s99
      %s117 = sphi 0, %s117
      %s119 = sphi 0, %s117
      %s120 = sphi 0, %s119
      %s134 = sphi 0, %s120
      %s138 = sphi 0, %s138
      %s140 = sphi 0, %s138
      %s141 = sphi 0, %s140
      %s155 = sphi 0, %s141
      %s159 = sphi 0, %s159
      %s161 = sphi 0, %s159
      %s162 = sphi 0, %s161
      %s176 = sphi 0, %s162
      %s180 = sphi 0, %s180
      %s182 = sphi 0, %s180
      %s183 = sphi 0, %s182
      %s197 = sphi 0, %s183
      %s201 = sphi 0, %s201
      %s203 = sphi 0, %s201
      %s204 = sphi 0, %s203
      %s218 = sphi 0, %s204
      %s222 = sphi 0, %s222
      %s224 = sphi 0, %s222
      %s225 = sphi 0, %s224
      %s239 = sphi 0, %s225
      %s243 = sphi 0, %s243
      %s245 = sphi 0, %s243
      %s246 = sphi 0, %s245
      %s260 = sphi 0, %s246
      %s266 = sphi 0, %s268
      %s269 = sphi 0, %s266
      %s270 = sphi 0, %s269
      %s286 = sphi 0, %s270
    $region4: #{tpu_custom_call.1} parent=1 // loop_header_branch
      %23 = sbr.rel (%p21) target = $region8
    $region5: #{tpu_custom_call.1} parent=1 // loop_body
      %s25 = ssub.s32 %s20, 1
      %s26 = ssub.s32 %s20, 2
      %s27 = sadd.s32 %s20, 1
      %s28 = ssub.s32 %s20, %s27
      %p29 = scmp.eq.s32.totalorder %s28, 0
      %s31 = sadd.s32 %s30, 1
      %s32 = scalar_select %p29, %s30, %s31
      %p35 = pneg %p29
      %p36 = scmp.eq.s32.totalorder %s20, 1
      %p37 = por %p35, %p36
      %p38 = scmp.ne.s32.totalorder %s30, %s33
      %p39 = scmp.eq.s32.totalorder %s20, 0
      %p40 = por %p38, %p39
      %p41 = scmp.ne.s32.totalorder %s30, %s33
      %p42 = scmp.eq.s32.totalorder %s25, 1
      %p43 = por %p41, %p42
      %p44 = scmp.ne.s32.totalorder %s33, %s34
      %p45 = scmp.eq.s32.totalorder %s25, 0
      %p46 = por %p44, %p45
      %p47 = scmp.ne.s32.totalorder %s33, %s34
      %p48 = scmp.eq.s32.totalorder %s26, 1
      %p49 = por %p47, %p48
      %p51 = scmp.ne.s32.totalorder %s34, %s50
      %p52 = scmp.eq.s32.totalorder %s26, 0
      %p53 = por %p51, %p52
      %s55 = sadd.s32 %s54, 1
      %p58 = scmp.eq.s32.totalorder %s20, 1
      %p59 = scmp.ne.s32.totalorder %s54, %s56
      %p60 = scmp.eq.s32.totalorder %s20, 0
      %p61 = por %p59, %p60
      %p62 = scmp.ne.s32.totalorder %s54, %s56
      %p63 = scmp.eq.s32.totalorder %s25, 1
      %p64 = por %p62, %p63
      %p65 = scmp.ne.s32.totalorder %s56, %s57
      %p66 = scmp.eq.s32.totalorder %s25, 0
      %p67 = por %p65, %p66
      %p68 = scmp.ne.s32.totalorder %s56, %s57
      %p69 = scmp.eq.s32.totalorder %s26, 1
      %p70 = por %p68, %p69
      %p72 = scmp.ne.s32.totalorder %s57, %s71
      %p73 = scmp.eq.s32.totalorder %s26, 0
      %p74 = por %p72, %p73
      %s76 = sadd.s32 %s75, 1
      %p79 = scmp.eq.s32.totalorder %s20, 1
      %p80 = scmp.ne.s32.totalorder %s75, %s77
      %p81 = scmp.eq.s32.totalorder %s20, 0
      %p82 = por %p80, %p81
      %p83 = scmp.ne.s32.totalorder %s75, %s77
      %p84 = scmp.eq.s32.totalorder %s25, 1
      %p85 = por %p83, %p84
      %p86 = scmp.ne.s32.totalorder %s77, %s78
      %p87 = scmp.eq.s32.totalorder %s25, 0
      %p88 = por %p86, %p87
      %p89 = scmp.ne.s32.totalorder %s77, %s78
      %p90 = scmp.eq.s32.totalorder %s26, 1
      %p91 = por %p89, %p90
      %p93 = scmp.ne.s32.totalorder %s78, %s92
      %p94 = scmp.eq.s32.totalorder %s26, 0
      %p95 = por %p93, %p94
      %s97 = sadd.s32 %s96, 1
      %p100 = scmp.eq.s32.totalorder %s20, 1
      %p101 = scmp.ne.s32.totalorder %s96, %s98
      %p102 = scmp.eq.s32.totalorder %s20, 0
      %p103 = por %p101, %p102
      %p104 = scmp.ne.s32.totalorder %s96, %s98
      %p105 = scmp.eq.s32.totalorder %s25, 1
      %p106 = por %p104, %p105
      %p107 = scmp.ne.s32.totalorder %s98, %s99
      %p108 = scmp.eq.s32.totalorder %s25, 0
      %p109 = por %p107, %p108
      %p110 = scmp.ne.s32.totalorder %s98, %s99
      %p111 = scmp.eq.s32.totalorder %s26, 1
      %p112 = por %p110, %p111
      %p114 = scmp.ne.s32.totalorder %s99, %s113
      %p115 = scmp.eq.s32.totalorder %s26, 0
      %p116 = por %p114, %p115
      %s118 = sadd.s32 %s117, 1
      %p121 = scmp.eq.s32.totalorder %s20, 1
      %p122 = scmp.ne.s32.totalorder %s117, %s119
      %p123 = scmp.eq.s32.totalorder %s20, 0
      %p124 = por %p122, %p123
      %p125 = scmp.ne.s32.totalorder %s117, %s119
      %p126 = scmp.eq.s32.totalorder %s25, 1
      %p127 = por %p125, %p126
      %p128 = scmp.ne.s32.totalorder %s119, %s120
      %p129 = scmp.eq.s32.totalorder %s25, 0
      %p130 = por %p128, %p129
      %p131 = scmp.ne.s32.totalorder %s119, %s120
      %p132 = scmp.eq.s32.totalorder %s26, 1
      %p133 = por %p131, %p132
      %p135 = scmp.ne.s32.totalorder %s120, %s134
      %p136 = scmp.eq.s32.totalorder %s26, 0
      %p137 = por %p135, %p136
      %s139 = sadd.s32 %s138, 1
      %p142 = scmp.eq.s32.totalorder %s20, 1
      %p143 = scmp.ne.s32.totalorder %s138, %s140
      %p144 = scmp.eq.s32.totalorder %s20, 0
      %p145 = por %p143, %p144
      %p146 = scmp.ne.s32.totalorder %s138, %s140
      %p147 = scmp.eq.s32.totalorder %s25, 1
      %p148 = por %p146, %p147
      %p149 = scmp.ne.s32.totalorder %s140, %s141
      %p150 = scmp.eq.s32.totalorder %s25, 0
      %p151 = por %p149, %p150
      %p152 = scmp.ne.s32.totalorder %s140, %s141
      %p153 = scmp.eq.s32.totalorder %s26, 1
      %p154 = por %p152, %p153
      %p156 = scmp.ne.s32.totalorder %s141, %s155
      %p157 = scmp.eq.s32.totalorder %s26, 0
      %p158 = por %p156, %p157
      %s160 = sadd.s32 %s159, 1
      %p163 = scmp.eq.s32.totalorder %s20, 1
      %p164 = scmp.ne.s32.totalorder %s159, %s161
      %p165 = scmp.eq.s32.totalorder %s20, 0
      %p166 = por %p164, %p165
      %p167 = scmp.ne.s32.totalorder %s159, %s161
      %p168 = scmp.eq.s32.totalorder %s25, 1
      %p169 = por %p167, %p168
      %p170 = scmp.ne.s32.totalorder %s161, %s162
      %p171 = scmp.eq.s32.totalorder %s25, 0
      %p172 = por %p170, %p171
      %p173 = scmp.ne.s32.totalorder %s161, %s162
      %p174 = scmp.eq.s32.totalorder %s26, 1
      %p175 = por %p173, %p174
      %p177 = scmp.ne.s32.totalorder %s162, %s176
      %p178 = scmp.eq.s32.totalorder %s26, 0
      %p179 = por %p177, %p178
      %s181 = sadd.s32 %s180, 1
      %p184 = scmp.eq.s32.totalorder %s20, 1
      %p185 = scmp.ne.s32.totalorder %s180, %s182
      %p186 = scmp.eq.s32.totalorder %s20, 0
      %p187 = por %p185, %p186
      %p188 = scmp.ne.s32.totalorder %s180, %s182
      %p189 = scmp.eq.s32.totalorder %s25, 1
      %p190 = por %p188, %p189
      %p191 = scmp.ne.s32.totalorder %s182, %s183
      %p192 = scmp.eq.s32.totalorder %s25, 0
      %p193 = por %p191, %p192
      %p194 = scmp.ne.s32.totalorder %s182, %s183
      %p195 = scmp.eq.s32.totalorder %s26, 1
      %p196 = por %p194, %p195
      %p198 = scmp.ne.s32.totalorder %s183, %s197
      %p199 = scmp.eq.s32.totalorder %s26, 0
      %p200 = por %p198, %p199
      %s202 = sadd.s32 %s201, 1
      %p205 = scmp.eq.s32.totalorder %s20, 1
      %p206 = scmp.ne.s32.totalorder %s201, %s203
      %p207 = scmp.eq.s32.totalorder %s20, 0
      %p208 = por %p206, %p207
      %p209 = scmp.ne.s32.totalorder %s201, %s203
      %p210 = scmp.eq.s32.totalorder %s25, 1
      %p211 = por %p209, %p210
      %p212 = scmp.ne.s32.totalorder %s203, %s204
      %p213 = scmp.eq.s32.totalorder %s25, 0
      %p214 = por %p212, %p213
      %p215 = scmp.ne.s32.totalorder %s203, %s204
      %p216 = scmp.eq.s32.totalorder %s26, 1
      %p217 = por %p215, %p216
      %p219 = scmp.ne.s32.totalorder %s204, %s218
      %p220 = scmp.eq.s32.totalorder %s26, 0
      %p221 = por %p219, %p220
      %s223 = sadd.s32 %s222, 1
      %p226 = scmp.eq.s32.totalorder %s20, 1
      %p227 = scmp.ne.s32.totalorder %s222, %s224
      %p228 = scmp.eq.s32.totalorder %s20, 0
      %p229 = por %p227, %p228
      %p230 = scmp.ne.s32.totalorder %s222, %s224
      %p231 = scmp.eq.s32.totalorder %s25, 1
      %p232 = por %p230, %p231
      %p233 = scmp.ne.s32.totalorder %s224, %s225
      %p234 = scmp.eq.s32.totalorder %s25, 0
      %p235 = por %p233, %p234
      %p236 = scmp.ne.s32.totalorder %s224, %s225
      %p237 = scmp.eq.s32.totalorder %s26, 1
      %p238 = por %p236, %p237
      %p240 = scmp.ne.s32.totalorder %s225, %s239
      %p241 = scmp.eq.s32.totalorder %s26, 0
      %p242 = por %p240, %p241
      %s244 = sadd.s32 %s243, 1
      %p247 = scmp.eq.s32.totalorder %s20, 1
      %p248 = scmp.ne.s32.totalorder %s243, %s245
      %p249 = scmp.eq.s32.totalorder %s20, 0
      %p250 = por %p248, %p249
      %p251 = scmp.ne.s32.totalorder %s243, %s245
      %p252 = scmp.eq.s32.totalorder %s25, 1
      %p253 = por %p251, %p252
      %p254 = scmp.ne.s32.totalorder %s245, %s246
      %p255 = scmp.eq.s32.totalorder %s25, 0
      %p256 = por %p254, %p255
      %p257 = scmp.ne.s32.totalorder %s245, %s246
      %p258 = scmp.eq.s32.totalorder %s26, 1
      %p259 = por %p257, %p258
      %p261 = scmp.ne.s32.totalorder %s246, %s260
      %p262 = scmp.eq.s32.totalorder %s26, 0
      %p263 = por %p261, %p262
      %s264 = ssub.s32 %s20, %s27
      %p265 = scmp.eq.s32.totalorder %s264, 0
      %s267 = sadd.s32 %s266, 1
      %s268 = scalar_select %p265, %s266, %s267
      %p271 = pneg %p265
      %p272 = scmp.eq.s32.totalorder %s20, 1
      %p273 = por %p271, %p272
      %p274 = scmp.ne.s32.totalorder %s266, %s269
      %p275 = scmp.eq.s32.totalorder %s20, 0
      %p276 = por %p274, %p275
      %p277 = scmp.ne.s32.totalorder %s266, %s269
      %p278 = scmp.eq.s32.totalorder %s25, 1
      %p279 = por %p277, %p278
      %p280 = scmp.ne.s32.totalorder %s269, %s270
      %p281 = scmp.eq.s32.totalorder %s25, 0
      %p282 = por %p280, %p281
      %p283 = scmp.ne.s32.totalorder %s269, %s270
      %p284 = scmp.eq.s32.totalorder %s26, 1
      %p285 = por %p283, %p284
      %p287 = scmp.ne.s32.totalorder %s270, %s286
      %p288 = scmp.eq.s32.totalorder %s26, 0
      %p289 = por %p287, %p288
      %p290 = scmp.le.s32.totalorder 1, %s20
      %p291 = scmp.lt.s32.totalorder %s20, 3
      %p292 = pnand %p290, %p291
      %p293 = pneg %p292
      // Predicated region
      $region9: #{tpu_custom_call.1} parent=5 // pred_check
        _
      $region10: #{tpu_custom_call.1} parent=5 // pred_check_branch
        %295 = sbr.rel (%p292) target = $region12
      $region11: #{tpu_custom_call.1} parent=5 // pred_region
        %s296 = ssub.s32 %s20, 1
        // Predicated region
        $region13: #{tpu_custom_call.1} parent=11 // pred_check
          %p297 = pneg %p67
        $region14: #{tpu_custom_call.1} parent=11 // pred_check_branch
          %299 = sbr.rel (%p297) target = $region16
        $region15: #{tpu_custom_call.1} parent=11 // pred_region
          _
        $region16: #{tpu_custom_call.1} parent=11 // pred_fallthru
          _
        // Predicated region
        $region17: #{tpu_custom_call.1} parent=11 // pred_check
          %p300 = pneg %p88
        $region18: #{tpu_custom_call.1} parent=11 // pred_check_branch
          %302 = sbr.rel (%p300) target = $region20
        $region19: #{tpu_custom_call.1} parent=11 // pred_region
          _
        $region20: #{tpu_custom_call.1} parent=11 // pred_fallthru
          _
        // Predicated region
        $region21: #{tpu_custom_call.1} parent=11 // pred_check
          %p303 = pneg %p109
        $region22: #{tpu_custom_call.1} parent=11 // pred_check_branch
          %305 = sbr.rel (%p303) target = $region24
        $region23: #{tpu_custom_call.1} parent=11 // pred_region
          _
        $region24: #{tpu_custom_call.1} parent=11 // pred_fallthru
          _
        // Predicated region
        $region25: #{tpu_custom_call.1} parent=11 // pred_check
          %p306 = pneg %p130
        $region26: #{tpu_custom_call.1} parent=11 // pred_check_branch
          %308 = sbr.rel (%p306) target = $region28
        $region27: #{tpu_custom_call.1} parent=11 // pred_region
          _
        $region28: #{tpu_custom_call.1} parent=11 // pred_fallthru
          _
        // Predicated region
        $region29: #{tpu_custom_call.1} parent=11 // pred_check
          %p309 = pneg %p151
        $region30: #{tpu_custom_call.1} parent=11 // pred_check_branch
          %311 = sbr.rel (%p309) target = $region32
        $region31: #{tpu_custom_call.1} parent=11 // pred_region
          _
        $region32: #{tpu_custom_call.1} parent=11 // pred_fallthru
          _
        // Predicated region
        $region33: #{tpu_custom_call.1} parent=11 // pred_check
          %p312 = pneg %p172
        $region34: #{tpu_custom_call.1} parent=11 // pred_check_branch
          %314 = sbr.rel (%p312) target = $region36
        $region35: #{tpu_custom_call.1} parent=11 // pred_region
          _
        $region36: #{tpu_custom_call.1} parent=11 // pred_fallthru
          _
        // Predicated region
        $region37: #{tpu_custom_call.1} parent=11 // pred_check
          %p315 = pneg %p193
        $region38: #{tpu_custom_call.1} parent=11 // pred_check_branch
          %317 = sbr.rel (%p315) target = $region40
        $region39: #{tpu_custom_call.1} parent=11 // pred_region
          _
        $region40: #{tpu_custom_call.1} parent=11 // pred_fallthru
          _
        // Predicated region
        $region41: #{tpu_custom_call.1} parent=11 // pred_check
          %p318 = pneg %p214
        $region42: #{tpu_custom_call.1} parent=11 // pred_check_branch
          %320 = sbr.rel (%p318) target = $region44
        $region43: #{tpu_custom_call.1} parent=11 // pred_region
          _
        $region44: #{tpu_custom_call.1} parent=11 // pred_fallthru
          _
        // Predicated region
        $region45: #{tpu_custom_call.1} parent=11 // pred_check
          %p321 = pneg %p235
        $region46: #{tpu_custom_call.1} parent=11 // pred_check_branch
          %323 = sbr.rel (%p321) target = $region48
        $region47: #{tpu_custom_call.1} parent=11 // pred_region
          _
        $region48: #{tpu_custom_call.1} parent=11 // pred_fallthru
          _
        // Predicated region
        $region49: #{tpu_custom_call.1} parent=11 // pred_check
          %p324 = pneg %p256
        $region50: #{tpu_custom_call.1} parent=11 // pred_check_branch
          %326 = sbr.rel (%p324) target = $region52
        $region51: #{tpu_custom_call.1} parent=11 // pred_region
          _
        $region52: #{tpu_custom_call.1} parent=11 // pred_fallthru
          _
      $region12: #{tpu_custom_call.1} parent=5 // pred_fallthru
        _
      %p327 = scmp.lt.s32.totalorder %s20, 2
      // Predicated region
      $region53: #{tpu_custom_call.1} parent=5 // pred_check
        %p328 = pneg %p327
      $region54: #{tpu_custom_call.1} parent=5 // pred_check_branch
        %330 = sbr.rel (%p328) target = $region56
      $region55: #{tpu_custom_call.1} parent=5 // pred_region
        // Predicated region
        $region57: #{tpu_custom_call.1} parent=55 // pred_check
          %p331 = pneg %p40
        $region58: #{tpu_custom_call.1} parent=55 // pred_check_branch
          %333 = sbr.rel (%p331) target = $region60
        $region59: #{tpu_custom_call.1} parent=55 // pred_region
          %p334 = scmp.lt.s32.totalorder %s20, 1
          %s335 = scalar_select %p334, %s20, 1
          %s336 = smul.addr %s335, 8
          %s337 = smul.addr %s336, 4
          %s338 = scalar_lea.vmem %s0, %s337
        $region60: #{tpu_custom_call.1} parent=55 // pred_fallthru
          _
      $region56: #{tpu_custom_call.1} parent=5 // pred_fallthru
        _
      %p339 = scmp.le.s32.totalorder 1, %s20
      %p340 = scmp.lt.s32.totalorder %s20, 3
      %p341 = pnand %p339, %p340
      %p342 = pneg %p341
      // Predicated region
      $region61: #{tpu_custom_call.1} parent=5 // pred_check
        _
      $region62: #{tpu_custom_call.1} parent=5 // pred_check_branch
        %344 = sbr.rel (%p341) target = $region64
      $region63: #{tpu_custom_call.1} parent=5 // pred_region
        %s345 = ssub.s32 %s20, 1
        %p346 = scmp.lt.s32.totalorder %s25, 1
        %s347 = scalar_select %p346, %s25, 1
        %s348 = smul.addr %s347, 8
        %s349 = smul.addr %s348, 4
        %s350 = scalar_lea.vmem %s0, %s349
        %p351 = pneg %p46
        %p352 = pneg %p43
        %p353 = pneg %p67
        %p354 = pneg %p64
        %p355 = pneg %p88
        %p356 = pneg %p85
        %p357 = pneg %p109
        %p358 = pneg %p106
        %p359 = pneg %p130
        %p360 = pneg %p127
        %p361 = pneg %p151
        %p362 = pneg %p148
        %p363 = pneg %p172
        %p364 = pneg %p169
        %p365 = pneg %p193
        %p366 = pneg %p190
        %p367 = pneg %p214
        %p368 = pneg %p211
        %p369 = pneg %p235
        %p370 = pneg %p232
        %p371 = pneg %p256
        %p372 = pneg %p253
        %p373 = pneg %p282
        %p374 = pneg %p279
        %s375 = sand.u32 %s269, 1
        %s376 = scalar_lea.sflag [#allocation3], %s375
        %s377 = sand.u32 %s269, 1
        %s378 = smul.addr %s377, 128
        %s379 = scalar_lea.vmem [#allocation2], %s378
        %p380 = scmp.lt.s32.totalorder %s25, 1
        %s381 = scalar_select %p380, %s25, 1
        %s382 = smul.addr %s381, 8
        %s383 = smul.addr %s382, 4
        %s384 = scalar_lea.vmem %s0, %s383
        %v386 = vld [vmem:[%s384] sm:$0xff]
        %v387 = vld [vmem:[%s384 + $0x8] sm:$0xff]
        %v388 = vld [vmem:[%s384 + $0x10] sm:$0xff]
        %v389 = vld [vmem:[%s384 + $0x18] sm:$0xff]
        %v390 = vld [vmem:[%s1] sm:$0xf]
        %v391 = vld [vmem:[%s1 + $0x4] sm:$0xf]
        %v392 = vld [vmem:[%s1 + $0x8] sm:$0xf]
        %v393 = vld [vmem:[%s1 + $0xc] sm:$0xf]
        %v394 = vld [vmem:[%s1 + $0x10] sm:$0xf]
        %v395 = vld [vmem:[%s1 + $0x14] sm:$0xf]
        %v396 = vld [vmem:[%s1 + $0x18] sm:$0xf]
        %v397 = vld [vmem:[%s1 + $0x1c] sm:$0xf]
        %v398 = vld [vmem:[%s7] sm:$0xf]
        %v399 = vld [vmem:[%s7 + $0x4] sm:$0xf]
        %v400 = vld [vmem:[%s7 + $0x8] sm:$0xf]
        %v401 = vld [vmem:[%s7 + $0xc] sm:$0xf]
        %v402 = vld [vmem:[%s7 + $0x10] sm:$0xf]
        %v403 = vld [vmem:[%s7 + $0x14] sm:$0xf]
        %v404 = vld [vmem:[%s7 + $0x18] sm:$0xf]
        %v405 = vld [vmem:[%s7 + $0x1c] sm:$0xf]
        %v406 = vld [vmem:[%s7 + $0x20] sm:$0xf]
        %v407 = vld [vmem:[%s7 + $0x24] sm:$0xf]
        %v408 = vld [vmem:[%s7 + $0x28] sm:$0xf]
        %v409 = vld [vmem:[%s7 + $0x2c] sm:$0xf]
        %v410 = vld [vmem:[%s7 + $0x30] sm:$0xf]
        %v411 = vld [vmem:[%s7 + $0x34] sm:$0xf]
        %v412 = vld [vmem:[%s7 + $0x38] sm:$0xf]
        %v413 = vld [vmem:[%s7 + $0x3c] sm:$0xf]
        %v414 = vld [vmem:[%s7 + $0x40] sm:$0xf]
        %v415 = vld [vmem:[%s7 + $0x44] sm:$0xf]
        %v416 = vld [vmem:[%s7 + $0x48] sm:$0xf]
        %v417 = vld [vmem:[%s7 + $0x4c] sm:$0xf]
        %v418 = vld [vmem:[%s7 + $0x50] sm:$0xf]
        %v419 = vld [vmem:[%s7 + $0x54] sm:$0xf]
        %v420 = vld [vmem:[%s7 + $0x58] sm:$0xf]
        %v421 = vld [vmem:[%s7 + $0x5c] sm:$0xf]
        %v422 = vld [vmem:[%s7 + $0x60] sm:$0xf]
        %v423 = vld [vmem:[%s7 + $0x64] sm:$0xf]
        %v424 = vld [vmem:[%s7 + $0x68] sm:$0xf]
        %v425 = vld [vmem:[%s7 + $0x6c] sm:$0xf]
        %v426 = vld [vmem:[%s7 + $0x70] sm:$0xf]
        %v427 = vld [vmem:[%s7 + $0x74] sm:$0xf]
        %v428 = vld [vmem:[%s7 + $0x78] sm:$0xf]
        %v429 = vld [vmem:[%s7 + $0x7c] sm:$0xf]
        %v434 = vunpack.c.l.b16 %v386
        %v435 = vunpack.c.h.b16 %v386
        %v436 = vunpack.c.l.b16 %v387
        %v437 = vunpack.c.h.b16 %v387
        %v438 = vunpack.c.l.b16 %v388
        %v439 = vunpack.c.h.b16 %v388
        %v440 = vunpack.c.l.b16 %v389
        %v441 = vunpack.c.h.b16 %v389
        %v442 = vpack.c.b16 %v436, %v434
        %v443 = vpack.c.b16 %v437, %v435
        %v444 = vpack.c.b16 %v440, %v438
        %v445 = vpack.c.b16 %v441, %v439
        %v482 = vunpack.c.l.b16 %v398
        %v483 = vunpack.c.l.b16 %v399
        %v484 = vunpack.c.l.b16 %v400
        %v485 = vunpack.c.l.b16 %v401
        %v486 = vunpack.c.l.b16 %v402
        %v487 = vunpack.c.l.b16 %v403
        %v488 = vunpack.c.l.b16 %v404
        %v489 = vunpack.c.l.b16 %v405
        %v490 = vunpack.c.l.b16 %v406
        %v491 = vunpack.c.l.b16 %v407
        %v492 = vunpack.c.l.b16 %v408
        %v493 = vunpack.c.l.b16 %v409
        %v494 = vunpack.c.l.b16 %v410
        %v495 = vunpack.c.l.b16 %v411
        %v496 = vunpack.c.l.b16 %v412
        %v497 = vunpack.c.l.b16 %v413
        %v498 = vunpack.c.l.b16 %v414
        %v499 = vunpack.c.l.b16 %v415
        %v500 = vunpack.c.l.b16 %v416
        %v501 = vunpack.c.l.b16 %v417
        %v502 = vunpack.c.l.b16 %v418
        %v503 = vunpack.c.l.b16 %v419
        %v504 = vunpack.c.l.b16 %v420
        %v505 = vunpack.c.l.b16 %v421
        %v506 = vunpack.c.l.b16 %v422
        %v507 = vunpack.c.l.b16 %v423
        %v508 = vunpack.c.l.b16 %v424
        %v509 = vunpack.c.l.b16 %v425
        %v510 = vunpack.c.l.b16 %v426
        %v511 = vunpack.c.l.b16 %v427
        %v512 = vunpack.c.l.b16 %v428
        %v513 = vunpack.c.l.b16 %v429
        %v514 = vpack.c.b16 %v483, %v482
        %v515 = vpack.c.b16 %v485, %v484
        %v516 = vpack.c.b16 %v487, %v486
        %v517 = vpack.c.b16 %v489, %v488
        %v518 = vpack.c.b16 %v491, %v490
        %v519 = vpack.c.b16 %v493, %v492
        %v520 = vpack.c.b16 %v495, %v494
        %v521 = vpack.c.b16 %v497, %v496
        %v522 = vpack.c.b16 %v499, %v498
        %v523 = vpack.c.b16 %v501, %v500
        %v524 = vpack.c.b16 %v503, %v502
        %v525 = vpack.c.b16 %v505, %v504
        %v526 = vpack.c.b16 %v507, %v506
        %v527 = vpack.c.b16 %v509, %v508
        %v528 = vpack.c.b16 %v511, %v510
        %v529 = vpack.c.b16 %v513, %v512
        %546 = vmatprep.subr.bf16.mxu0 0
        %547 = vmatpush1.bf16.msra.mxu0 %v514
        %548 = vmatprep.subr.bf16.mxu0 0
        %549 = vmatpush1.bf16.msra.mxu0 %v515
        %550 = vmatprep.subr.bf16.mxu0 0
        %551 = vmatpush1.bf16.msra.mxu0 %v516
        %552 = vmatprep.subr.bf16.mxu0 0
        %553 = vmatpush1.bf16.msra.mxu0 %v517
        %554 = vmatprep.subr.bf16.mxu0 0
        %555 = vmatpush1.bf16.msra.mxu0 %v518
        %556 = vmatprep.subr.bf16.mxu0 0
        %557 = vmatpush1.bf16.msra.mxu0 %v519
        %558 = vmatprep.subr.bf16.mxu0 0
        %559 = vmatpush1.bf16.msra.mxu0 %v520
        %560 = vmatprep.subr.bf16.mxu0 0
        %561 = vmatpush1.bf16.msra.mxu0 %v521
        %562 = vmatprep.subr.bf16.mxu0 0
        %563 = vmatpush1.bf16.msra.mxu0 %v522
        %564 = vmatprep.subr.bf16.mxu0 0
        %565 = vmatpush1.bf16.msra.mxu0 %v523
        %566 = vmatprep.subr.bf16.mxu0 0
        %567 = vmatpush1.bf16.msra.mxu0 %v524
        %568 = vmatprep.subr.bf16.mxu0 0
        %569 = vmatpush1.bf16.msra.mxu0 %v525
        %570 = vmatprep.subr.bf16.mxu0 0
        %571 = vmatpush1.bf16.msra.mxu0 %v526
        %572 = vmatprep.subr.bf16.mxu0 0
        %573 = vmatpush1.bf16.msra.mxu0 %v527
        %574 = vmatprep.subr.bf16.mxu0 0
        %575 = vmatpush1.bf16.msra.mxu0 %v528
        %576 = vmatprep.subr.bf16.mxu0 0
        %577 = vmatpush1.bf16.msra.mxu0 %v529
        %578 = vmatprep.mubr.bf16.mxu0 %v443
        %579 = vmatmul.mubr.bf16.gmra.mrb[0].mxu0 %v442
        %v580 = vpop.f32.mrb[0].mxu0
        %v581 = vadd.f32 0.0, %v580
        %v582 = vpop.f32.mrb[0].mxu0
        %v583 = vpop.f32.mrb[0].mxu0
        %v584 = vadd.f32 0.0, %v583
        %v585 = vpop.f32.mrb[0].mxu0
        %586 = vmatprep.mubr.bf16.mxu0 %v445
        %587 = vmatmul.mubr.bf16.gmra.mrb[0].mxu0 %v444
        %v588 = vpop.f32.mrb[0].mxu0
        %v589 = vadd.f32 0.0, %v588
        %v590 = vpop.f32.mrb[0].mxu0
        %v591 = vpop.f32.mrb[0].mxu0
        %v592 = vadd.f32 0.0, %v591
        %v593 = vpop.f32.mrb[0].mxu0
        %594 = vdwg.mxu0
        %v595 = vld [vmem:[%s2] sm:$0xf]
        %v596 = vld [vmem:[%s2 + $0x4] sm:$0xf]
        %v597 = vld [vmem:[%s2 + $0x8] sm:$0xf]
        %v598 = vld [vmem:[%s2 + $0xc] sm:$0xf]
        %v599 = vpack.c.bf16 %v584, %v581
        %v600 = vpack.c.bf16 %v592, %v589
        %v605 = vunpack.c.l.b16 %v595
        %v606 = vunpack.c.l.b16 %v596
        %v607 = vunpack.c.l.b16 %v597
        %v608 = vunpack.c.l.b16 %v598
        %v609 = vpack.c.b16 %v606, %v605
        %v610 = vpack.c.b16 %v608, %v607
        %vm611 = vcmask 261120
        %v613 = vsel %vm611, %v609, 0
        %v616 = vsel %vm611, %v610, 0
        %618 = vmatprep.subr.bf16.mxu0 0
        %619 = vmatpush1.bf16.msra.mxu0 %v599
        %620 = vmatprep.subr.bf16.mxu0 0
        %621 = vmatpush1.bf16.msra.mxu0 %v600
        %622 = vmatprep.subr.bf16.mxu0 0
        %623 = vmatpush1.bf16.msra.mxu0 0
        %624 = vmatprep.subr.bf16.mxu0 0
        %625 = vmatpush1.bf16.msra.mxu0 0
        %626 = vmatprep.subr.bf16.mxu0 0
        %627 = vmatpush1.bf16.msra.mxu0 0
        %628 = vmatprep.subr.bf16.mxu0 0
        %629 = vmatpush1.bf16.msra.mxu0 0
        %630 = vmatprep.subr.bf16.mxu0 0
        %631 = vmatpush1.bf16.msra.mxu0 0
        %632 = vmatprep.subr.bf16.mxu0 0
        %633 = vmatpush1.bf16.msra.mxu0 0
        %634 = vmatprep.subr.bf16.mxu0 0
        %635 = vmatpush1.bf16.msra.mxu0 0
        %636 = vmatprep.subr.bf16.mxu0 0
        %637 = vmatpush1.bf16.msra.mxu0 0
        %638 = vmatprep.subr.bf16.mxu0 0
        %639 = vmatpush1.bf16.msra.mxu0 0
        %640 = vmatprep.subr.bf16.mxu0 0
        %641 = vmatpush1.bf16.msra.mxu0 0
        %642 = vmatprep.subr.bf16.mxu0 0
        %643 = vmatpush1.bf16.msra.mxu0 0
        %644 = vmatprep.subr.bf16.mxu0 0
        %645 = vmatpush1.bf16.msra.mxu0 0
        %646 = vmatprep.subr.bf16.mxu0 0
        %647 = vmatpush1.bf16.msra.mxu0 0
        %648 = vmatprep.subr.bf16.mxu0 0
        %649 = vmatpush1.bf16.msra.mxu0 0
        %650 = vmatprep.mubr.bf16.mxu0 0
        %651 = vmatmul.mubr.bf16.gmra.mrb[0].mxu0 %v613
        %v652 = vpop.f32.mrb[0].mxu0
        %v653 = vadd.f32 0.0, %v652
        %v654 = vpop.f32.mrb[0].mxu0
        %v655 = vpop.f32.mrb[0].mxu0
        %v656 = vadd.f32 0.0, %v655
        %v657 = vpop.f32.mrb[0].mxu0
        %658 = vmatprep.mubr.bf16.mxu0 0
        %659 = vmatmul.mubr.bf16.gmra.mrb[0].mxu0 %v616
        %v660 = vpop.f32.mrb[0].mxu0
        %v661 = vadd.f32 0.0, %v660
        %v662 = vpop.f32.mrb[0].mxu0
        %v663 = vpop.f32.mrb[0].mxu0
        %v664 = vadd.f32 0.0, %v663
        %v665 = vpop.f32.mrb[0].mxu0
        %666 = vdwg.mxu0
        %v667 = vld [vmem:[%s3] sm:$0xff]
        %v668 = vld [vmem:[%s3 + $0x8] sm:$0xff]
        %v669 = vld [vmem:[%s3 + $0x10] sm:$0xff]
        %v670 = vld [vmem:[%s3 + $0x18] sm:$0xff]
        %672 = vset.pattern.permute.xlu0 0
        %673 = vperm.xlu0 %672, %v667
        %v674 = vpop.permute.xlu0 %673
        %677 = vset.pattern.permute.xlu0 0
        %678 = vperm.xlu0 %677, %v668
        %v679 = vpop.permute.xlu0 %678
        %682 = vset.pattern.permute.xlu0 0
        %683 = vperm.xlu0 %682, %v669
        %v684 = vpop.permute.xlu0 %683
        %687 = vset.pattern.permute.xlu0 0
        %688 = vperm.xlu0 %687, %v670
        %v689 = vpop.permute.xlu0 %688
        %v691 = vmul.f32 %v653, %v674
        %v692 = vmul.f32 %v656, %v679
        %v693 = vmul.f32 %v661, %v684
        %v694 = vmul.f32 %v664, %v689
        %v695 = vld [vmem:[%s4] sm:$0xff]
        %v696 = vld [vmem:[%s4 + $0x8] sm:$0xff]
        %v697 = vld [vmem:[%s4 + $0x10] sm:$0xff]
        %v698 = vld [vmem:[%s4 + $0x18] sm:$0xff]
        %700 = vset.pattern.permute.xlu0 0
        %701 = vperm.xlu0 %700, %v695
        %v702 = vpop.permute.xlu0 %701
        %705 = vset.pattern.permute.xlu0 0
        %706 = vperm.xlu0 %705, %v696
        %v707 = vpop.permute.xlu0 %706
        %710 = vset.pattern.permute.xlu0 0
        %711 = vperm.xlu0 %710, %v697
        %v712 = vpop.permute.xlu0 %711
        %715 = vset.pattern.permute.xlu0 0
        %716 = vperm.xlu0 %715, %v698
        %v717 = vpop.permute.xlu0 %716
        %v719 = vadd.f32 %v691, %v702
        %v720 = vadd.f32 %v692, %v707
        %v721 = vadd.f32 %v693, %v712
        %v722 = vadd.f32 %v694, %v717
        %v723 = vmax.f32 %v719, 0.0
        %v724 = vmax.f32 %v720, 0.0
        %v725 = vmax.f32 %v721, 0.0
        %v726 = vmax.f32 %v722, 0.0
        %v727 = vld [vmem:[%s5] sm:$0xff]
        %v728 = vld [vmem:[%s5 + $0x8] sm:$0xff]
        %v729 = vld [vmem:[%s5 + $0x10] sm:$0xff]
        %v730 = vld [vmem:[%s5 + $0x18] sm:$0xff]
        %v731 = vmul.f32 %v723, %v727
        %v732 = vmul.f32 %v724, %v728
        %v733 = vmul.f32 %v725, %v729
        %v734 = vmul.f32 %v726, %v730
        %v735 = vld [vmem:[%s6] sm:$0xf]
        %v736 = vld [vmem:[%s6 + $0x4] sm:$0xf]
        %v737 = vld [vmem:[%s6 + $0x8] sm:$0xf]
        %v738 = vld [vmem:[%s6 + $0xc] sm:$0xf]
        %v739 = vld [vmem:[%s6 + $0x10] sm:$0xf]
        %v740 = vld [vmem:[%s6 + $0x14] sm:$0xf]
        %v741 = vld [vmem:[%s6 + $0x18] sm:$0xf]
        %v742 = vld [vmem:[%s6 + $0x1c] sm:$0xf]
        %v743 = vpack.c.bf16 %v732, %v731
        %v744 = vpack.c.bf16 %v734, %v733
        %v753 = vunpack.c.l.b16 %v735
        %v754 = vunpack.c.l.b16 %v736
        %v755 = vunpack.c.l.b16 %v737
        %v756 = vunpack.c.l.b16 %v738
        %v757 = vunpack.c.l.b16 %v739
        %v758 = vunpack.c.l.b16 %v740
        %v759 = vunpack.c.l.b16 %v741
        %v760 = vunpack.c.l.b16 %v742
        %v761 = vpack.c.b16 %v754, %v753
        %v762 = vpack.c.b16 %v756, %v755
        %v763 = vpack.c.b16 %v758, %v757
        %v764 = vpack.c.b16 %v760, %v759
        %v766 = vsel %vm611, %v761, 0
        %v769 = vsel %vm611, %v762, 0
        %v772 = vsel %vm611, %v763, 0
        %v775 = vsel %vm611, %v764, 0
        %777 = vmatprep.subr.bf16.mxu0 0
        %778 = vmatpush1.bf16.msra.mxu0 %v743
        %779 = vmatprep.subr.bf16.mxu0 0
        %780 = vmatpush1.bf16.msra.mxu0 %v744
        %781 = vmatprep.subr.bf16.mxu0 0
        %782 = vmatpush1.bf16.msra.mxu0 0
        %783 = vmatprep.subr.bf16.mxu0 0
        %784 = vmatpush1.bf16.msra.mxu0 0
        %785 = vmatprep.subr.bf16.mxu0 0
        %786 = vmatpush1.bf16.msra.mxu0 0
        %787 = vmatprep.subr.bf16.mxu0 0
        %788 = vmatpush1.bf16.msra.mxu0 0
        %789 = vmatprep.subr.bf16.mxu0 0
        %790 = vmatpush1.bf16.msra.mxu0 0
        %791 = vmatprep.subr.bf16.mxu0 0
        %792 = vmatpush1.bf16.msra.mxu0 0
        %793 = vmatprep.subr.bf16.mxu0 0
        %794 = vmatpush1.bf16.msra.mxu0 0
        %795 = vmatprep.subr.bf16.mxu0 0
        %796 = vmatpush1.bf16.msra.mxu0 0
        %797 = vmatprep.subr.bf16.mxu0 0
        %798 = vmatpush1.bf16.msra.mxu0 0
        %799 = vmatprep.subr.bf16.mxu0 0
        %800 = vmatpush1.bf16.msra.mxu0 0
        %801 = vmatprep.subr.bf16.mxu0 0
        %802 = vmatpush1.bf16.msra.mxu0 0
        %803 = vmatprep.subr.bf16.mxu0 0
        %804 = vmatpush1.bf16.msra.mxu0 0
        %805 = vmatprep.subr.bf16.mxu0 0
        %806 = vmatpush1.bf16.msra.mxu0 0
        %807 = vmatprep.subr.bf16.mxu0 0
        %808 = vmatpush1.bf16.msra.mxu0 0
        %809 = vmatprep.mubr.bf16.mxu0 0
        %810 = vmatmul.mubr.bf16.gmra.mrb[0].mxu0 %v766
        %v811 = vpop.f32.mrb[0].mxu0
        %v812 = vadd.f32 0.0, %v811
        %v813 = vpop.f32.mrb[0].mxu0
        %v814 = vpop.f32.mrb[0].mxu0
        %v815 = vadd.f32 0.0, %v814
        %v816 = vpop.f32.mrb[0].mxu0
        %817 = vmatprep.mubr.bf16.mxu0 0
        %818 = vmatmul.mubr.bf16.gmra.mrb[0].mxu0 %v769
        %v819 = vpop.f32.mrb[0].mxu0
        %v820 = vadd.f32 0.0, %v819
        %v821 = vpop.f32.mrb[0].mxu0
        %v822 = vpop.f32.mrb[0].mxu0
        %v823 = vadd.f32 0.0, %v822
        %v824 = vpop.f32.mrb[0].mxu0
        %825 = vmatprep.mubr.bf16.mxu0 0
        %826 = vmatmul.mubr.bf16.gmra.mrb[0].mxu0 %v772
        %v827 = vpop.f32.mrb[0].mxu0
        %v828 = vadd.f32 0.0, %v827
        %v829 = vpop.f32.mrb[0].mxu0
        %v830 = vpop.f32.mrb[0].mxu0
        %v831 = vadd.f32 0.0, %v830
        %v832 = vpop.f32.mrb[0].mxu0
        %833 = vmatprep.mubr.bf16.mxu0 0
        %834 = vmatmul.mubr.bf16.gmra.mrb[0].mxu0 %v775
        %v835 = vpop.f32.mrb[0].mxu0
        %v836 = vadd.f32 0.0, %v835
        %v837 = vpop.f32.mrb[0].mxu0
        %v838 = vpop.f32.mrb[0].mxu0
        %v839 = vadd.f32 0.0, %v838
        %v840 = vpop.f32.mrb[0].mxu0
        %841 = vdwg.mxu0
        %v842 = vpack.c.bf16 %v815, %v812
        %v843 = vpack.c.bf16 %v823, %v820
        %v844 = vpack.c.bf16 %v831, %v828
        %v845 = vpack.c.bf16 %v839, %v836
        %v846 = vld [vmem:[%s8] sm:$0xff]
        %v847 = vld [vmem:[%s8 + $0x8] sm:$0xff]
        %v848 = vld [vmem:[%s8 + $0x10] sm:$0xff]
        %v849 = vld [vmem:[%s8 + $0x18] sm:$0xff]
        %v850 = vld [vmem:[%s8 + $0x20] sm:$0xff]
        %v851 = vld [vmem:[%s8 + $0x28] sm:$0xff]
        %v852 = vld [vmem:[%s8 + $0x30] sm:$0x11]
        %v860 = vunpack.c.l.b16 %v846
        %v861 = vunpack.c.h.b16 %v846
        %v862 = vunpack.c.l.b16 %v847
        %v863 = vunpack.c.h.b16 %v847
        %v864 = vunpack.c.l.b16 %v848
        %v865 = vunpack.c.h.b16 %v848
        %v866 = vunpack.c.l.b16 %v849
        %v867 = vunpack.c.h.b16 %v849
        %v868 = vunpack.c.l.b16 %v850
        %v869 = vunpack.c.h.b16 %v850
        %v870 = vunpack.c.l.b16 %v851
        %v871 = vunpack.c.h.b16 %v851
        %v872 = vunpack.c.l.b16 %v852
        %v873 = vunpack.c.h.b16 %v852
        %v874 = vpack.c.b16 %v862, %v860
        %v875 = vpack.c.b16 %v863, %v861
        %v876 = vpack.c.b16 %v866, %v864
        %v877 = vpack.c.b16 %v867, %v865
        %v878 = vpack.c.b16 %v870, %v868
        %v879 = vpack.c.b16 %v871, %v869
        %v880 = vpack.c.b16 %v872, %v872
        %v881 = vpack.c.b16 %v873, %v873
        %vm888 = vcmask 408576
        %v890 = vsel %vm888, %v842, 0
        %v893 = vsel %vm888, %v843, 0
        %v896 = vsel %vm888, %v844, 0
        %v899 = vsel %vm888, %v845, 0
        %vm901 = vcmask 1040384
        %v903 = vsel %vm901, %v880, 0
        %v906 = vsel %vm901, %v881, 0
        %908 = vmatprep.subr.bf16.mxu0 %v875
        %909 = vmatpush1.bf16.msra.mxu0 %v874
        %910 = vmatprep.subr.bf16.mxu0 %v877
        %911 = vmatpush1.bf16.msra.mxu0 %v876
        %912 = vmatprep.subr.bf16.mxu0 %v879
        %913 = vmatpush1.bf16.msra.mxu0 %v878
        %914 = vmatprep.subr.bf16.mxu0 %v906
        %915 = vmatpush1.bf16.msra.mxu0 %v903
        %916 = vmatprep.subr.bf16.mxu0 0
        %917 = vmatpush1.bf16.msra.mxu0 0
        %918 = vmatprep.subr.bf16.mxu0 0
        %919 = vmatpush1.bf16.msra.mxu0 0
        %920 = vmatprep.subr.bf16.mxu0 0
        %921 = vmatpush1.bf16.msra.mxu0 0
        %922 = vmatprep.subr.bf16.mxu0 0
        %923 = vmatpush1.bf16.msra.mxu0 0
        %924 = vmatprep.subr.bf16.mxu0 0
        %925 = vmatpush1.bf16.msra.mxu0 0
        %926 = vmatprep.subr.bf16.mxu0 0
        %927 = vmatpush1.bf16.msra.mxu0 0
        %928 = vmatprep.subr.bf16.mxu0 0
        %929 = vmatpush1.bf16.msra.mxu0 0
        %930 = vmatprep.subr.bf16.mxu0 0
        %931 = vmatpush1.bf16.msra.mxu0 0
        %932 = vmatprep.subr.bf16.mxu0 0
        %933 = vmatpush1.bf16.msra.mxu0 0
        %934 = vmatprep.subr.bf16.mxu0 0
        %935 = vmatpush1.bf16.msra.mxu0 0
        %936 = vmatprep.subr.bf16.mxu0 0
        %937 = vmatpush1.bf16.msra.mxu0 0
        %938 = vmatprep.subr.bf16.mxu0 0
        %939 = vmatpush1.bf16.msra.mxu0 0
        %940 = vmatprep.mubr.bf16.mxu0 0
        %941 = vmatmul.mubr.bf16.gmra.mrb[0].mxu0 %v890
        %v942 = vpop.f32.mrb[0].mxu0
        %v943 = vadd.f32 0.0, %v942
        %v944 = vpop.f32.mrb[0].mxu0
        %v945 = vadd.f32 0.0, %v944
        %v946 = vpop.f32.mrb[0].mxu0
        %v947 = vadd.f32 0.0, %v946
        %v948 = vpop.f32.mrb[0].mxu0
        %v949 = vadd.f32 0.0, %v948
        %950 = vmatprep.mubr.bf16.mxu0 0
        %951 = vmatmul.mubr.bf16.gmra.mrb[0].mxu0 %v893
        %v952 = vpop.f32.mrb[0].mxu0
        %v953 = vadd.f32 0.0, %v952
        %v954 = vpop.f32.mrb[0].mxu0
        %v955 = vadd.f32 0.0, %v954
        %v956 = vpop.f32.mrb[0].mxu0
        %v957 = vadd.f32 0.0, %v956
        %v958 = vpop.f32.mrb[0].mxu0
        %v959 = vadd.f32 0.0, %v958
        %960 = vmatprep.mubr.bf16.mxu0 0
        %961 = vmatmul.mubr.bf16.gmra.mrb[0].mxu0 %v896
        %v962 = vpop.f32.mrb[0].mxu0
        %v963 = vadd.f32 0.0, %v962
        %v964 = vpop.f32.mrb[0].mxu0
        %v965 = vadd.f32 0.0, %v964
        %v966 = vpop.f32.mrb[0].mxu0
        %v967 = vadd.f32 0.0, %v966
        %v968 = vpop.f32.mrb[0].mxu0
        %v969 = vadd.f32 0.0, %v968
        %970 = vmatprep.mubr.bf16.mxu0 0
        %971 = vmatmul.mubr.bf16.gmra.mrb[0].mxu0 %v899
        %v972 = vpop.f32.mrb[0].mxu0
        %v973 = vadd.f32 0.0, %v972
        %v974 = vpop.f32.mrb[0].mxu0
        %v975 = vadd.f32 0.0, %v974
        %v976 = vpop.f32.mrb[0].mxu0
        %v977 = vadd.f32 0.0, %v976
        %v978 = vpop.f32.mrb[0].mxu0
        %v979 = vadd.f32 0.0, %v978
        %980 = vdwg.mxu0
        %v989 = vunpack.c.l.b16 %v390
        %v990 = vunpack.c.l.b16 %v391
        %v991 = vunpack.c.l.b16 %v392
        %v992 = vunpack.c.l.b16 %v393
        %v993 = vunpack.c.l.b16 %v394
        %v994 = vunpack.c.l.b16 %v395
        %v995 = vunpack.c.l.b16 %v396
        %v996 = vunpack.c.l.b16 %v397
        %v997 = vpack.c.b16 %v990, %v989
        %v998 = vpack.c.b16 %v992, %v991
        %v999 = vpack.c.b16 %v994, %v993
        %v1000 = vpack.c.b16 %v996, %v995
        %v1002 = vsel %vm611, %v997, 0
        %v1005 = vsel %vm611, %v998, 0
        %v1008 = vsel %vm611, %v999, 0
        %v1011 = vsel %vm611, %v1000, 0
        %1013 = vmatprep.subr.bf16.mxu0 %v443
        %1014 = vmatpush1.bf16.msra.mxu0 %v442
        %1015 = vmatprep.subr.bf16.mxu0 %v445
        %1016 = vmatpush1.bf16.msra.mxu0 %v444
        %1017 = vmatprep.subr.bf16.mxu0 0
        %1018 = vmatpush1.bf16.msra.mxu0 0
        %1019 = vmatprep.subr.bf16.mxu0 0
        %1020 = vmatpush1.bf16.msra.mxu0 0
        %1021 = vmatprep.subr.bf16.mxu0 0
        %1022 = vmatpush1.bf16.msra.mxu0 0
        %1023 = vmatprep.subr.bf16.mxu0 0
        %1024 = vmatpush1.bf16.msra.mxu0 0
        %1025 = vmatprep.subr.bf16.mxu0 0
        %1026 = vmatpush1.bf16.msra.mxu0 0
        %1027 = vmatprep.subr.bf16.mxu0 0
        %1028 = vmatpush1.bf16.msra.mxu0 0
        %1029 = vmatprep.subr.bf16.mxu0 0
        %1030 = vmatpush1.bf16.msra.mxu0 0
        %1031 = vmatprep.subr.bf16.mxu0 0
        %1032 = vmatpush1.bf16.msra.mxu0 0
        %1033 = vmatprep.subr.bf16.mxu0 0
        %1034 = vmatpush1.bf16.msra.mxu0 0
        %1035 = vmatprep.subr.bf16.mxu0 0
        %1036 = vmatpush1.bf16.msra.mxu0 0
        %1037 = vmatprep.subr.bf16.mxu0 0
        %1038 = vmatpush1.bf16.msra.mxu0 0
        %1039 = vmatprep.subr.bf16.mxu0 0
        %1040 = vmatpush1.bf16.msra.mxu0 0
        %1041 = vmatprep.subr.bf16.mxu0 0
        %1042 = vmatpush1.bf16.msra.mxu0 0
        %1043 = vmatprep.subr.bf16.mxu0 0
        %1044 = vmatpush1.bf16.msra.mxu0 0
        %1045 = vmatprep.mubr.bf16.mxu0 0
        %1046 = vmatmul.mubr.bf16.gmra.mrb[0].mxu0 %v1002
        %v1047 = vpop.f32.mrb[0].mxu0
        %v1048 = vadd.f32 %v943, %v1047
        %v1049 = vpop.f32.mrb[0].mxu0
        %v1050 = vadd.f32 %v945, %v1049
        %v1051 = vpop.f32.mrb[0].mxu0
        %v1052 = vadd.f32 %v947, %v1051
        %v1053 = vpop.f32.mrb[0].mxu0
        %v1054 = vadd.f32 %v949, %v1053
        %1055 = vmatprep.mubr.bf16.mxu0 0
        %1056 = vmatmul.mubr.bf16.gmra.mrb[0].mxu0 %v1005
        %v1057 = vpop.f32.mrb[0].mxu0
        %v1058 = vadd.f32 %v953, %v1057
        %v1059 = vpop.f32.mrb[0].mxu0
        %v1060 = vadd.f32 %v955, %v1059
        %v1061 = vpop.f32.mrb[0].mxu0
        %v1062 = vadd.f32 %v957, %v1061
        %v1063 = vpop.f32.mrb[0].mxu0
        %v1064 = vadd.f32 %v959, %v1063
        %1065 = vmatprep.mubr.bf16.mxu0 0
        %1066 = vmatmul.mubr.bf16.gmra.mrb[0].mxu0 %v1008
        %v1067 = vpop.f32.mrb[0].mxu0
        %v1068 = vadd.f32 %v963, %v1067
        %v1069 = vpop.f32.mrb[0].mxu0
        %v1070 = vadd.f32 %v965, %v1069
        %v1071 = vpop.f32.mrb[0].mxu0
        %v1072 = vadd.f32 %v967, %v1071
        %v1073 = vpop.f32.mrb[0].mxu0
        %v1074 = vadd.f32 %v969, %v1073
        %1075 = vmatprep.mubr.bf16.mxu0 0
        %1076 = vmatmul.mubr.bf16.gmra.mrb[0].mxu0 %v1011
        %v1077 = vpop.f32.mrb[0].mxu0
        %v1078 = vadd.f32 %v973, %v1077
        %v1079 = vpop.f32.mrb[0].mxu0
        %v1080 = vadd.f32 %v975, %v1079
        %v1081 = vpop.f32.mrb[0].mxu0
        %v1082 = vadd.f32 %v977, %v1081
        %v1083 = vpop.f32.mrb[0].mxu0
        %v1084 = vadd.f32 %v979, %v1083
        %1085 = vdwg.mxu0
        %v1086 = vld [vmem:[%s9] sm:$0xff]
        %v1087 = vld [vmem:[%s9 + $0x8] sm:$0xff]
        %v1088 = vld [vmem:[%s9 + $0x10] sm:$0xff]
        %v1089 = vld [vmem:[%s9 + $0x18] sm:$0xff]
        %v1090 = vld [vmem:[%s9 + $0x20] sm:$0xff]
        %v1091 = vld [vmem:[%s9 + $0x28] sm:$0xff]
        %v1092 = vld [vmem:[%s9 + $0x30] sm:$0xff]
        %v1093 = vld [vmem:[%s9 + $0x38] sm:$0xff]
        %1095 = vset.pattern.permute.xlu0 0
        %1096 = vperm.xlu0 %1095, %v1086
        %v1097 = vpop.permute.xlu0 %1096
        %1100 = vset.pattern.permute.xlu0 0
        %1101 = vperm.xlu0 %1100, %v1087
        %v1102 = vpop.permute.xlu0 %1101
        %1105 = vset.pattern.permute.xlu0 0
        %1106 = vperm.xlu0 %1105, %v1088
        %v1107 = vpop.permute.xlu0 %1106
        %1110 = vset.pattern.permute.xlu0 0
        %1111 = vperm.xlu0 %1110, %v1089
        %v1112 = vpop.permute.xlu0 %1111
        %1115 = vset.pattern.permute.xlu0 0
        %1116 = vperm.xlu0 %1115, %v1090
        %v1117 = vpop.permute.xlu0 %1116
        %1120 = vset.pattern.permute.xlu0 0
        %1121 = vperm.xlu0 %1120, %v1091
        %v1122 = vpop.permute.xlu0 %1121
        %1125 = vset.pattern.permute.xlu0 0
        %1126 = vperm.xlu0 %1125, %v1092
        %v1127 = vpop.permute.xlu0 %1126
        %1130 = vset.pattern.permute.xlu0 0
        %1131 = vperm.xlu0 %1130, %v1093
        %v1132 = vpop.permute.xlu0 %1131
        %v1134 = vmul.f32 %v1048, %v1097
        %v1135 = vmul.f32 %v1050, %v1097
        %v1136 = vmul.f32 %v1052, %v1102
        %v1137 = vmul.f32 %v1054, %v1102
        %v1138 = vmul.f32 %v1058, %v1107
        %v1139 = vmul.f32 %v1060, %v1107
        %v1140 = vmul.f32 %v1062, %v1112
        %v1141 = vmul.f32 %v1064, %v1112
        %v1142 = vmul.f32 %v1068, %v1117
        %v1143 = vmul.f32 %v1070, %v1117
        %v1144 = vmul.f32 %v1072, %v1122
        %v1145 = vmul.f32 %v1074, %v1122
        %v1146 = vmul.f32 %v1078, %v1127
        %v1147 = vmul.f32 %v1080, %v1127
        %v1148 = vmul.f32 %v1082, %v1132
        %v1149 = vmul.f32 %v1084, %v1132
        %v1150 = vld [vmem:[%s10] sm:$0xff]
        %v1151 = vld [vmem:[%s10 + $0x8] sm:$0xff]
        %v1152 = vld [vmem:[%s10 + $0x10] sm:$0xff]
        %v1153 = vld [vmem:[%s10 + $0x18] sm:$0xff]
        %v1154 = vld [vmem:[%s10 + $0x20] sm:$0xff]
        %v1155 = vld [vmem:[%s10 + $0x28] sm:$0xff]
        %v1156 = vld [vmem:[%s10 + $0x30] sm:$0xff]
        %v1157 = vld [vmem:[%s10 + $0x38] sm:$0xff]
        %1159 = vset.pattern.permute.xlu0 0
        %1160 = vperm.xlu0 %1159, %v1150
        %v1161 = vpop.permute.xlu0 %1160
        %1164 = vset.pattern.permute.xlu0 0
        %1165 = vperm.xlu0 %1164, %v1151
        %v1166 = vpop.permute.xlu0 %1165
        %1169 = vset.pattern.permute.xlu0 0
        %1170 = vperm.xlu0 %1169, %v1152
        %v1171 = vpop.permute.xlu0 %1170
        %1174 = vset.pattern.permute.xlu0 0
        %1175 = vperm.xlu0 %1174, %v1153
        %v1176 = vpop.permute.xlu0 %1175
        %1179 = vset.pattern.permute.xlu0 0
        %1180 = vperm.xlu0 %1179, %v1154
        %v1181 = vpop.permute.xlu0 %1180
        %1184 = vset.pattern.permute.xlu0 0
        %1185 = vperm.xlu0 %1184, %v1155
        %v1186 = vpop.permute.xlu0 %1185
        %1189 = vset.pattern.permute.xlu0 0
        %1190 = vperm.xlu0 %1189, %v1156
        %v1191 = vpop.permute.xlu0 %1190
        %1194 = vset.pattern.permute.xlu0 0
        %1195 = vperm.xlu0 %1194, %v1157
        %v1196 = vpop.permute.xlu0 %1195
        %v1198 = vadd.f32 %v1134, %v1161
        %v1199 = vadd.f32 %v1135, %v1161
        %v1200 = vadd.f32 %v1136, %v1166
        %v1201 = vadd.f32 %v1137, %v1166
        %v1202 = vadd.f32 %v1138, %v1171
        %v1203 = vadd.f32 %v1139, %v1171
        %v1204 = vadd.f32 %v1140, %v1176
        %v1205 = vadd.f32 %v1141, %v1176
        %v1206 = vadd.f32 %v1142, %v1181
        %v1207 = vadd.f32 %v1143, %v1181
        %v1208 = vadd.f32 %v1144, %v1186
        %v1209 = vadd.f32 %v1145, %v1186
        %v1210 = vadd.f32 %v1146, %v1191
        %v1211 = vadd.f32 %v1147, %v1191
        %v1212 = vadd.f32 %v1148, %v1196
        %v1213 = vadd.f32 %v1149, %v1196
        %v1214 = vmax.f32 %v1198, 0.0
        %v1215 = vmax.f32 %v1199, 0.0
        %v1216 = vmax.f32 %v1200, 0.0
        %v1217 = vmax.f32 %v1201, 0.0
        %v1218 = vmax.f32 %v1202, 0.0
        %v1219 = vmax.f32 %v1203, 0.0
        %v1220 = vmax.f32 %v1204, 0.0
        %v1221 = vmax.f32 %v1205, 0.0
        %v1222 = vmax.f32 %v1206, 0.0
        %v1223 = vmax.f32 %v1207, 0.0
        %v1224 = vmax.f32 %v1208, 0.0
        %v1225 = vmax.f32 %v1209, 0.0
        %v1226 = vmax.f32 %v1210, 0.0
        %v1227 = vmax.f32 %v1211, 0.0
        %v1228 = vmax.f32 %v1212, 0.0
        %v1229 = vmax.f32 %v1213, 0.0
        %1230 = vst [vmem:[%s379] sm:$0xff] %v1214
        %1231 = vst [vmem:[%s379 + $0x8] sm:$0xff] %v1215
        %1232 = vst [vmem:[%s379 + $0x10] sm:$0xff] %v1216
        %1233 = vst [vmem:[%s379 + $0x18] sm:$0xff] %v1217
        %1234 = vst [vmem:[%s379 + $0x20] sm:$0xff] %v1218
        %1235 = vst [vmem:[%s379 + $0x28] sm:$0xff] %v1219
        %1236 = vst [vmem:[%s379 + $0x30] sm:$0xff] %v1220
        %1237 = vst [vmem:[%s379 + $0x38] sm:$0xff] %v1221
        %1238 = vst [vmem:[%s379 + $0x40] sm:$0xff] %v1222
        %1239 = vst [vmem:[%s379 + $0x48] sm:$0xff] %v1223
        %1240 = vst [vmem:[%s379 + $0x50] sm:$0xff] %v1224
        %1241 = vst [vmem:[%s379 + $0x58] sm:$0xff] %v1225
        %1242 = vst [vmem:[%s379 + $0x60] sm:$0xff] %v1226
        %1243 = vst [vmem:[%s379 + $0x68] sm:$0xff] %v1227
        %1244 = vst [vmem:[%s379 + $0x70] sm:$0xff] %v1228
        %1245 = vst [vmem:[%s379 + $0x78] sm:$0xff] %v1229
        %s1246 = sand.u32 %s269, 1
        %s1247 = scalar_lea.sflag [#allocation3], %s1246
        %s1248 = sand.u32 %s269, 1
        %s1249 = smul.addr %s1248, 128
        %s1250 = scalar_lea.vmem [#allocation2], %s1249
        // Predicated region
        $region65: #{tpu_custom_call.1} parent=63 // pred_check
          %p1251 = pneg %p279
        $region66: #{tpu_custom_call.1} parent=63 // pred_check_branch
          %1253 = sbr.rel (%p1251) target = $region68
        $region67: #{tpu_custom_call.1} parent=63 // pred_region
          %s1255 = ssub.s32 2048, 2048
          %1256 = vsyncadd %s1247, %s1255
          %s1257 = smul.addr %s25, 16
          %s1258 = smul.addr %s1257, 128
          %s1259 = scalar_lea.hbm %s11, %s1258
          %s1260 = sshll.u32 %s1250, 4
          %s1261 = int_to_ptr.vmem [resolvable:$true] %s1260
          %1266 = dma.vmem_to_hbm [thread:$0]  %s1261, 2048, %s1259, %s1247, 256, 256, 16
        $region68: #{tpu_custom_call.1} parent=63 // pred_fallthru
          _
      $region64: #{tpu_custom_call.1} parent=5 // pred_fallthru
        _
      %p1267 = scmp.le.s32.totalorder 2, %s20
      // Predicated region
      $region69: #{tpu_custom_call.1} parent=5 // pred_check
        %p1268 = pneg %p1267
      $region70: #{tpu_custom_call.1} parent=5 // pred_check_branch
        %1270 = sbr.rel (%p1268) target = $region72
      $region71: #{tpu_custom_call.1} parent=5 // pred_region
        %s1271 = ssub.s32 %s20, 2
        // Predicated region
        $region73: #{tpu_custom_call.1} parent=71 // pred_check
          %p1272 = pneg %p285
        $region74: #{tpu_custom_call.1} parent=71 // pred_check_branch
          %1274 = sbr.rel (%p1272) target = $region76
        $region75: #{tpu_custom_call.1} parent=71 // pred_region
          %s1275 = sand.u32 %s270, 1
          %s1276 = scalar_lea.sflag [#allocation3], %s1275
          %s1277 = sand.u32 %s270, 1
          %s1278 = smul.addr %s1277, 128
          %s1279 = scalar_lea.vmem [#allocation2], %s1278
          %1280 = dma.done %s1276, 2048
        $region76: #{tpu_custom_call.1} parent=71 // pred_fallthru
          _
      $region72: #{tpu_custom_call.1} parent=5 // pred_fallthru
        _
    $region6: #{tpu_custom_call.1} parent=1 // loop_footer
      %s24 = sadd.s32 1, %s20
    $region7: #{tpu_custom_call.1} parent=1 // loop_footer_branch
      %19 = sbr.rel target = $region3
    $region8: #{tpu_custom_call.1} parent=1 // loop_exit
      _
    %1281 = vsyncpa [#allocation3], 1
    %s1282 = scalar_lea.sflag [#allocation3], 1
    %1283 = vsyncpa %s1282, 1

</llo_original>
